<compile_context>
chip_gen: v6e
topology: v6e:2x2x1
jax: 0.10.0
libtpu: 0.0.40
codegen_flags: <defaults>
</compile_context>

<pallas_src>
import jax
import jax.numpy as jnp
from jax.experimental import pallas as pl
from jax.experimental.pallas import tpu as pltpu


def _select_kernel(x_ref, c_ref, w_ref, b_ref, o_ref):
    # x_ref: (Cin, T)  input channels on sublanes, pixels on lanes
    # c_ref: (Cc,  T)  complement channels on sublanes, pixels on lanes
    # w_ref: (Cin, 1)  1x1-conv weight (f32), broadcast over lanes
    # b_ref: (1,)      conv bias (f32), SMEM scalar
    # o_ref: (Cc,  T)
    x = x_ref[...].astype(jnp.float32)                            # (Cin, T)
    w = w_ref[...]                                                # (Cin, 1)
    logits = jnp.sum(x * w, axis=0, keepdims=True) + b_ref[0]     # (1, T)
    gate = jax.nn.sigmoid(logits)                                 # (1, T)
    o_ref[...] = (gate * c_ref[...].astype(jnp.float32)).astype(o_ref.dtype)


def select_forward(x_nchw, complement_nchw, weight, bias, *, tile_hw=2048):
    """x: (N, Cin, H, W); complement: (N, Cc, H, W);
    weight: (1, Cin, 1, 1) conv weight; bias: (1,) conv bias."""
    N, Cin, H, W = x_nchw.shape
    Nc, Cc, Hc, Wc = complement_nchw.shape
    assert (N, H, W) == (Nc, Hc, Wc)
    HW = H * W

    # Free reshapes (row-major contiguous): zero HBM transpose traffic.
    x3 = x_nchw.reshape(N, Cin, HW)
    c3 = complement_nchw.reshape(N, Cc, HW)
    w2 = weight.reshape(1, Cin).T.astype(jnp.float32)   # (Cin, 1)
    b1 = bias.reshape(1).astype(jnp.float32)            # (1,)

    # Pixel tile: a multiple of 128 lanes, capped by tile_hw.  A trailing
    # partial block (HW % T != 0) is masked by Pallas at the store.
    T = min(tile_hw, ((HW + 127) // 128) * 128)
    T = max(128, (T // 128) * 128)
    grid = (N, pl.cdiv(HW, T))

    out3 = pl.pallas_call(
        _select_kernel,
        out_shape=jax.ShapeDtypeStruct((N, Cc, HW), complement_nchw.dtype),
        grid_spec=pltpu.PrefetchScalarGridSpec(
            num_scalar_prefetch=0,
            grid=grid,
            in_specs=[
                pl.BlockSpec((pl.Squeezed(), Cin, T), lambda n, i: (n, 0, i)),
                pl.BlockSpec((pl.Squeezed(), Cc, T), lambda n, i: (n, 0, i)),
                pl.BlockSpec((Cin, 1), lambda n, i: (0, 0)),
                pl.BlockSpec(memory_space=pltpu.MemorySpace.SMEM),
            ],
            out_specs=pl.BlockSpec((pl.Squeezed(), Cc, T),
                                   lambda n, i: (n, 0, i)),
        ),
        compiler_params=pltpu.CompilerParams(
            dimension_semantics=("parallel", "parallel")),
    )(x3, c3, w2, b1)

    # Free reshape back to NCHW.
    return out3.reshape(N, Cc, H, W)


def select_reference(x_nchw, complement_nchw, weight, bias):
    # Plain-JAX reference of the PyTorch forward (1x1 conv, stride 1, pad 0).
    gate = jnp.einsum("nchw,oc->nohw", x_nchw, weight.reshape(1, -1)) \
           + bias.reshape(1, 1, 1, 1)
    gate = jax.nn.sigmoid(gate)
    return gate * complement_nchw


if __name__ == "__main__":
    key = jax.random.PRNGKey(0)
    k1, k2, k3, k4 = jax.random.split(key, 4)

    N, in_nc, out_nc, H, W = 2, 48, 32, 16, 16

    x = jax.random.normal(k1, (N, in_nc, H, W), dtype=jnp.float32)
    complement = jax.random.normal(k2, (N, out_nc, H, W), dtype=jnp.float32)
    # Deterministic synthetic parameters (Conv2d(in_nc, 1, kernel_size=1)).
    weight = jax.random.normal(k3, (1, in_nc, 1, 1), dtype=jnp.float32) * 0.1
    bias = jax.random.normal(k4, (1,), dtype=jnp.float32) * 0.1

    out = select_forward(x, complement, weight, bias)
    out = jax.block_until_ready(out)

    ref = select_reference(x, complement, weight, bias)
    assert out.shape == (N, out_nc, H, W)
    assert jnp.allclose(out, ref, atol=1e-5, rtol=1e-5), "mismatch vs reference"

    print("KERNEL_OK")
</pallas_src>

<mosaic_0001>
module attributes {stable_mosaic.version = 11 : i64} {
  func.func @_select_kernel(%arg0: i32, %arg1: i32, %arg2: memref<1x48x256xf32, #tpu.memory_space<vmem>>, %arg3: memref<1x32x256xf32, #tpu.memory_space<vmem>>, %arg4: memref<48x1xf32, #tpu.memory_space<vmem>>, %arg5: memref<1xf32, #tpu.memory_space<smem>>, %arg6: memref<1x32x256xf32, #tpu.memory_space<vmem>>) attributes {dimension_semantics = [#tpu.dimension_semantics<parallel>, #tpu.dimension_semantics<parallel>], iteration_bounds = array<i64: 2, 1>, scalar_prefetch = 0 : i64, scratch_operands = 0 : i64, tpu.core_type = #tpu.core_type<tc>, window_params = [{transform_indices = @transform_0, window_bounds = array<i64: 1, 48, 256>}, {transform_indices = @transform_1, window_bounds = array<i64: 1, 32, 256>}, {pipeline_mode = #tpu.pipeline_mode<synchronous>, transform_indices = @transform_2, window_bounds = array<i64: 48, 1>}, {transform_indices = @transform_3, window_bounds = array<i64: 1>}, {transform_indices = @transform_4, window_bounds = array<i64: 1, 32, 256>}]} {
    %c0 = arith.constant 0 : index
    %c0_0 = arith.constant 0 : index
    %c0_1 = arith.constant 0 : index
    %0 = vector.load %arg2[%c0, %c0_0, %c0_1] : memref<1x48x256xf32, #tpu.memory_space<vmem>>, vector<1x48x256xf32>
    %1 = vector.shape_cast %0 : vector<1x48x256xf32> to vector<48x256xf32>
    %c0_2 = arith.constant 0 : index
    %c0_3 = arith.constant 0 : index
    %2 = vector.load %arg4[%c0_2, %c0_3] : memref<48x1xf32, #tpu.memory_space<vmem>>, vector<48x1xf32>
    %3 = vector.broadcast %2 : vector<48x1xf32> to vector<48x256xf32>
    %4 = arith.mulf %1, %3 : vector<48x256xf32>
    %cst = arith.constant dense<0.000000e+00> : vector<256xf32>
    %5 = vector.multi_reduction <add>, %4, %cst [0] : vector<48x256xf32> to vector<256xf32>
    %6 = vector.shape_cast %5 : vector<256xf32> to vector<1x256xf32>
    %c0_4 = arith.constant 0 : index
    %7 = memref.load %arg5[%c0_4] : memref<1xf32, #tpu.memory_space<smem>>
    %8 = vector.broadcast %7 : f32 to vector<1x256xf32>
    %9 = arith.addf %6, %8 : vector<1x256xf32>
    %10 = arith.negf %9 : vector<1x256xf32>
    %11 = math.exp %10 : vector<1x256xf32>
    %cst_5 = arith.constant 1.000000e+00 : f32
    %12 = vector.broadcast %cst_5 : f32 to vector<1x256xf32>
    %13 = arith.addf %12, %11 : vector<1x256xf32>
    %14 = arith.divf %12, %13 : vector<1x256xf32>
    %c0_6 = arith.constant 0 : index
    %c0_7 = arith.constant 0 : index
    %c0_8 = arith.constant 0 : index
    %15 = vector.load %arg3[%c0_6, %c0_7, %c0_8] : memref<1x32x256xf32, #tpu.memory_space<vmem>>, vector<1x32x256xf32>
    %16 = vector.shape_cast %15 : vector<1x32x256xf32> to vector<32x256xf32>
    %17 = vector.broadcast %14 : vector<1x256xf32> to vector<32x256xf32>
    %18 = arith.mulf %17, %16 : vector<32x256xf32>
    %c0_9 = arith.constant 0 : index
    %c0_10 = arith.constant 0 : index
    %c0_11 = arith.constant 0 : index
    %19 = vector.load %arg6[%c0_9, %c0_10, %c0_11] : memref<1x32x256xf32, #tpu.memory_space<vmem>>, vector<1x32x256xf32>
    %20 = vector.shape_cast %19 : vector<1x32x256xf32> to vector<32x256xf32>
    %21 = vector.shape_cast %18 : vector<32x256xf32> to vector<1x32x256xf32>
    tpu.vector_store %arg6[%c0_9, %c0_10, %c0_11], %21 {strides = array<i32>} : memref<1x32x256xf32, #tpu.memory_space<vmem>>, vector<1x32x256xf32>,
    return
  }
  func.func @transform_0(%arg0: i32, %arg1: i32) -> (i32, i32, i32) {
    %c0_i32 = arith.constant 0 : i32
    %c0_i32_0 = arith.constant 0 : i32
    return %arg0, %c0_i32, %arg1 : i32, i32, i32
  }
  func.func @transform_1(%arg0: i32, %arg1: i32) -> (i32, i32, i32) {
    %c0_i32 = arith.constant 0 : i32
    %c0_i32_0 = arith.constant 0 : i32
    return %arg0, %c0_i32, %arg1 : i32, i32, i32
  }
  func.func @transform_2(%arg0: i32, %arg1: i32) -> (i32, i32) {
    %c0_i32 = arith.constant 0 : i32
    %c0_i32_0 = arith.constant 0 : i32
    %c0_i32_1 = arith.constant 0 : i32
    return %c0_i32, %c0_i32_0 : i32, i32
  }
  func.func @transform_3(%arg0: i32, %arg1: i32) -> i32 {
    %c0_i32 = arith.constant 0 : i32
    %c0_i32_0 = arith.constant 0 : i32
    return %c0_i32 : i32
  }
  func.func @transform_4(%arg0: i32, %arg1: i32) -> (i32, i32, i32) {
    %c0_i32 = arith.constant 0 : i32
    %c0_i32_0 = arith.constant 0 : i32
    return %arg0, %c0_i32, %arg1 : i32, i32, i32
  }
}

</mosaic_0001>

<llo_original>
// kernel: tpu_custom_call.1
$region0: #{tpu_custom_call.1}
  #allocation0 [shape = 'u32[]', space=smem, size = 0x4, offset = 0x4, fixed_abs, tag = 'smem constant byte address 0x4 - core index']
  #allocation1 [shape = 'u32[144,128]{1,0:T(1,128)}', space=vmem, size = 0x12000, scoped, tag = 'internal scratch']
  #allocation2 [shape = 'f32[1]{0:T(128)S(6)}', space=smem, size = 0x200, scoped, tag = 'scoped memory for tpu_custom_call.1']
  %s0 = inlined_call_operand.hbm [shape: f32[2,48,256], index: 0, kind: input, shape index: {}]
  %s1 = inlined_call_operand.hbm [shape: f32[2,32,256], index: 1, kind: input, shape index: {}]
  %s2 = inlined_call_operand.vmem [shape: f32[48,1], index: 2, kind: input, shape index: {}]
  %s3 = inlined_call_operand.<no memory space> [shape: f32[1], index: 3, kind: input, shape index: {}]
  %s4 = inlined_call_operand.hbm [shape: f32[2,32,256], index: 4, kind: output, shape index: {}]
  %s5 = sld [smem:[#allocation0]]
  $region57: #{tpu_custom_call.1} parent=0
    _
  %s7 = ssub.s32 1, %s5
  %s8 = scalar_select 0, %s7, %s5
  %9 = sst [smem:[#allocation2]] %s3
  $region1: #{tpu_custom_call.1} parent=0
    #allocation3 [shape = 'u8[98304]{0}', space=vmem, size = 0x18000, scoped, tag = 'input window, operand 0']
    #allocation4 [shape = 's32[2]{0}', space=sflag, size = 0x8, scoped, tag = 'scoped memory for tpu_custom_call.1']
    #allocation5 [shape = 's32[2]{0}', space=sflag, size = 0x8, scoped, tag = 'scoped memory for tpu_custom_call.1']
    #allocation6 [shape = 'u8[65536]{0}', space=vmem, size = 0x10000, scoped, tag = 'input window, operand 1']
    #allocation7 [shape = 's32[2]{0}', space=sflag, size = 0x8, scoped, tag = 'scoped memory for tpu_custom_call.1']
    #allocation8 [shape = 'u8[65536]{0}', space=vmem, size = 0x10000, scoped, tag = 'output window, operand 0']
    %10 = vsyncpa [#allocation4], 0
    %s11 = scalar_lea.sflag [#allocation4], 1
    %12 = vsyncpa %s11, 0
    %13 = vsyncpa [#allocation7], 0
    %s14 = scalar_lea.sflag [#allocation7], 1
    %15 = vsyncpa %s14, 0
    %16 = vsyncpa [#allocation5], 0
    %s17 = scalar_lea.sflag [#allocation5], 1
    %18 = vsyncpa %s17, 0
    loop: start=0, step=1, limit=4
    $region2: #{tpu_custom_call.1} parent=1 // loop_pre_header
      _
    $region3: #{tpu_custom_call.1} parent=1 // loop_header
      %s20 = sphi 0, %s24
      %p21 = scmp.ge.s32.totalorder %s20, 4
      %s27 = sphi 0, %s39
      %s28 = sphi 0, %s35
      %s29 = sphi 0, %s27
      %s30 = sphi 0, %s28
      %s31 = sphi 0, %s29
      %s32 = sphi 0, %s30
      %s44 = sphi 0, %s46
      %s47 = sphi 0, %s44
      %s48 = sphi 0, %s47
      %s64 = sphi 0, %s48
      %s72 = sphi 0, %s74
      %s75 = sphi 0, %s72
      %s76 = sphi 0, %s75
      %s92 = sphi 0, %s76
      %s96 = sphi 0, %s96
      %s98 = sphi 0, %s96
      %s99 = sphi 0, %s98
      %s113 = sphi 0, %s99
      %s117 = sphi 0, %s117
      %s119 = sphi 0, %s117
      %s120 = sphi 0, %s119
      %s134 = sphi 0, %s120
      %s142 = sphi 0, %s144
      %s145 = sphi 0, %s142
      %s146 = sphi 0, %s145
      %s162 = sphi 0, %s146
    $region4: #{tpu_custom_call.1} parent=1 // loop_header_branch
      %23 = sbr.rel (%p21) target = $region8
    $region5: #{tpu_custom_call.1} parent=1 // loop_body
      %s25 = ssub.s32 %s20, 1
      %s26 = ssub.s32 %s20, 2
      %s33 = sadd.s32 1, %s28
      %p34 = scmp.ge.s32.totalorder %s33, 1
      %s35 = scalar_select %p34, 0, %s33
      %s36 = sadd.s32 1, %s27
      %s37 = scalar_select %p34, %s36, %s27
      %p38 = scmp.ge.s32.totalorder %s37, 2
      %s39 = scalar_select %p38, 0, %s37
      %s40 = ssub.s32 %s27, %s39
      %s41 = ssub.s32 %s28, %s35
      %s42 = sor.u32 %s40, %s41
      %p43 = scmp.eq.s32.totalorder %s42, 0
      %s45 = sadd.s32 %s44, 1
      %s46 = scalar_select %p43, %s44, %s45
      %p49 = pneg %p43
      %p50 = scmp.eq.s32.totalorder %s20, 1
      %p51 = por %p49, %p50
      %p52 = scmp.ne.s32.totalorder %s44, %s47
      %p53 = scmp.eq.s32.totalorder %s20, 0
      %p54 = por %p52, %p53
      %p55 = scmp.ne.s32.totalorder %s44, %s47
      %p56 = scmp.eq.s32.totalorder %s25, 1
      %p57 = por %p55, %p56
      %p58 = scmp.ne.s32.totalorder %s47, %s48
      %p59 = scmp.eq.s32.totalorder %s25, 0
      %p60 = por %p58, %p59
      %p61 = scmp.ne.s32.totalorder %s47, %s48
      %p62 = scmp.eq.s32.totalorder %s26, 1
      %p63 = por %p61, %p62
      %p65 = scmp.ne.s32.totalorder %s48, %s64
      %p66 = scmp.eq.s32.totalorder %s26, 0
      %p67 = por %p65, %p66
      %s68 = ssub.s32 %s27, %s39
      %s69 = ssub.s32 %s28, %s35
      %s70 = sor.u32 %s68, %s69
      %p71 = scmp.eq.s32.totalorder %s70, 0
      %s73 = sadd.s32 %s72, 1
      %s74 = scalar_select %p71, %s72, %s73
      %p77 = pneg %p71
      %p78 = scmp.eq.s32.totalorder %s20, 1
      %p79 = por %p77, %p78
      %p80 = scmp.ne.s32.totalorder %s72, %s75
      %p81 = scmp.eq.s32.totalorder %s20, 0
      %p82 = por %p80, %p81
      %p83 = scmp.ne.s32.totalorder %s72, %s75
      %p84 = scmp.eq.s32.totalorder %s25, 1
      %p85 = por %p83, %p84
      %p86 = scmp.ne.s32.totalorder %s75, %s76
      %p87 = scmp.eq.s32.totalorder %s25, 0
      %p88 = por %p86, %p87
      %p89 = scmp.ne.s32.totalorder %s75, %s76
      %p90 = scmp.eq.s32.totalorder %s26, 1
      %p91 = por %p89, %p90
      %p93 = scmp.ne.s32.totalorder %s76, %s92
      %p94 = scmp.eq.s32.totalorder %s26, 0
      %p95 = por %p93, %p94
      %s97 = sadd.s32 %s96, 1
      %p100 = scmp.eq.s32.totalorder %s20, 1
      %p101 = scmp.ne.s32.totalorder %s96, %s98
      %p102 = scmp.eq.s32.totalorder %s20, 0
      %p103 = por %p101, %p102
      %p104 = scmp.ne.s32.totalorder %s96, %s98
      %p105 = scmp.eq.s32.totalorder %s25, 1
      %p106 = por %p104, %p105
      %p107 = scmp.ne.s32.totalorder %s98, %s99
      %p108 = scmp.eq.s32.totalorder %s25, 0
      %p109 = por %p107, %p108
      %p110 = scmp.ne.s32.totalorder %s98, %s99
      %p111 = scmp.eq.s32.totalorder %s26, 1
      %p112 = por %p110, %p111
      %p114 = scmp.ne.s32.totalorder %s99, %s113
      %p115 = scmp.eq.s32.totalorder %s26, 0
      %p116 = por %p114, %p115
      %s118 = sadd.s32 %s117, 1
      %p121 = scmp.eq.s32.totalorder %s20, 1
      %p122 = scmp.ne.s32.totalorder %s117, %s119
      %p123 = scmp.eq.s32.totalorder %s20, 0
      %p124 = por %p122, %p123
      %p125 = scmp.ne.s32.totalorder %s117, %s119
      %p126 = scmp.eq.s32.totalorder %s25, 1
      %p127 = por %p125, %p126
      %p128 = scmp.ne.s32.totalorder %s119, %s120
      %p129 = scmp.eq.s32.totalorder %s25, 0
      %p130 = por %p128, %p129
      %p131 = scmp.ne.s32.totalorder %s119, %s120
      %p132 = scmp.eq.s32.totalorder %s26, 1
      %p133 = por %p131, %p132
      %p135 = scmp.ne.s32.totalorder %s120, %s134
      %p136 = scmp.eq.s32.totalorder %s26, 0
      %p137 = por %p135, %p136
      %s138 = ssub.s32 %s27, %s39
      %s139 = ssub.s32 %s28, %s35
      %s140 = sor.u32 %s138, %s139
      %p141 = scmp.eq.s32.totalorder %s140, 0
      %s143 = sadd.s32 %s142, 1
      %s144 = scalar_select %p141, %s142, %s143
      %p147 = pneg %p141
      %p148 = scmp.eq.s32.totalorder %s20, 1
      %p149 = por %p147, %p148
      %p150 = scmp.ne.s32.totalorder %s142, %s145
      %p151 = scmp.eq.s32.totalorder %s20, 0
      %p152 = por %p150, %p151
      %p153 = scmp.ne.s32.totalorder %s142, %s145
      %p154 = scmp.eq.s32.totalorder %s25, 1
      %p155 = por %p153, %p154
      %p156 = scmp.ne.s32.totalorder %s145, %s146
      %p157 = scmp.eq.s32.totalorder %s25, 0
      %p158 = por %p156, %p157
      %p159 = scmp.ne.s32.totalorder %s145, %s146
      %p160 = scmp.eq.s32.totalorder %s26, 1
      %p161 = por %p159, %p160
      %p163 = scmp.ne.s32.totalorder %s146, %s162
      %p164 = scmp.eq.s32.totalorder %s26, 0
      %p165 = por %p163, %p164
      %p166 = scmp.le.s32.totalorder 1, %s20
      %p167 = scmp.lt.s32.totalorder %s20, 3
      %p168 = pnand %p166, %p167
      %p169 = pneg %p168
      // Predicated region
      $region9: #{tpu_custom_call.1} parent=5 // pred_check
        _
      $region10: #{tpu_custom_call.1} parent=5 // pred_check_branch
        %171 = sbr.rel (%p168) target = $region12
      $region11: #{tpu_custom_call.1} parent=5 // pred_region
        %s172 = ssub.s32 %s20, 1
        // Predicated region
        $region13: #{tpu_custom_call.1} parent=11 // pred_check
          %p173 = pneg %p109
        $region14: #{tpu_custom_call.1} parent=11 // pred_check_branch
          %175 = sbr.rel (%p173) target = $region16
        $region15: #{tpu_custom_call.1} parent=11 // pred_region
          _
        $region16: #{tpu_custom_call.1} parent=11 // pred_fallthru
          _
        // Predicated region
        $region17: #{tpu_custom_call.1} parent=11 // pred_check
          %p176 = pneg %p130
        $region18: #{tpu_custom_call.1} parent=11 // pred_check_branch
          %178 = sbr.rel (%p176) target = $region20
        $region19: #{tpu_custom_call.1} parent=11 // pred_region
          _
        $region20: #{tpu_custom_call.1} parent=11 // pred_fallthru
          _
      $region12: #{tpu_custom_call.1} parent=5 // pred_fallthru
        _
      %p179 = scmp.lt.s32.totalorder %s20, 2
      // Predicated region
      $region21: #{tpu_custom_call.1} parent=5 // pred_check
        %p180 = pneg %p179
      $region22: #{tpu_custom_call.1} parent=5 // pred_check_branch
        %182 = sbr.rel (%p180) target = $region24
      $region23: #{tpu_custom_call.1} parent=5 // pred_region
        // Predicated region
        $region25: #{tpu_custom_call.1} parent=23 // pred_check
          %p183 = pneg %p54
        $region26: #{tpu_custom_call.1} parent=23 // pred_check_branch
          %185 = sbr.rel (%p183) target = $region28
        $region27: #{tpu_custom_call.1} parent=23 // pred_region
          %s186 = sand.u32 %s44, 1
          %s187 = scalar_lea.sflag [#allocation4], %s186
          %s188 = sand.u32 %s44, 1
          %s189 = smul.addr %s188, 96
          %s190 = scalar_lea.vmem [#allocation3], %s189
          %s191 = smul.u32 2, %s28
          %s193 = ssub.s32 1536, 1536
          %194 = vsyncadd %s187, %s193
          %s195 = smul.addr %s27, 12
          %s196 = sadd.s32 %s191, %s195
          %s197 = smul.addr %s196, 128
          %s198 = scalar_lea.hbm %s0, %s197
          %s199 = sshll.u32 %s190, 4
          %s200 = int_to_ptr.vmem [resolvable:$true] %s199
          %205 = dma.hbm_to_vmem [thread:$0]  %s198, 1536, %s200, %s187, 256, 256, 16
        $region28: #{tpu_custom_call.1} parent=23 // pred_fallthru
          _
        // Predicated region
        $region29: #{tpu_custom_call.1} parent=23 // pred_check
          %p206 = pneg %p82
        $region30: #{tpu_custom_call.1} parent=23 // pred_check_branch
          %208 = sbr.rel (%p206) target = $region32
        $region31: #{tpu_custom_call.1} parent=23 // pred_region
          %s209 = sand.u32 %s72, 1
          %s210 = scalar_lea.sflag [#allocation7], %s209
          %s211 = sand.u32 %s72, 1
          %s212 = smul.addr %s211, 64
          %s213 = scalar_lea.vmem [#allocation6], %s212
          %s214 = smul.u32 2, %s28
          %s216 = ssub.s32 1024, 1024
          %217 = vsyncadd %s210, %s216
          %s218 = smul.addr %s27, 8
          %s219 = sadd.s32 %s214, %s218
          %s220 = smul.addr %s219, 128
          %s221 = scalar_lea.hbm %s1, %s220
          %s222 = sshll.u32 %s213, 4
          %s223 = int_to_ptr.vmem [resolvable:$true] %s222
          %228 = dma.hbm_to_vmem [thread:$0]  %s221, 1024, %s223, %s210, 256, 256, 16
        $region32: #{tpu_custom_call.1} parent=23 // pred_fallthru
          _
      $region24: #{tpu_custom_call.1} parent=5 // pred_fallthru
        _
      %p229 = scmp.le.s32.totalorder 1, %s20
      %p230 = scmp.lt.s32.totalorder %s20, 3
      %p231 = pnand %p229, %p230
      %p232 = pneg %p231
      // Predicated region
      $region33: #{tpu_custom_call.1} parent=5 // pred_check
        _
      $region34: #{tpu_custom_call.1} parent=5 // pred_check_branch
        %234 = sbr.rel (%p231) target = $region36
      $region35: #{tpu_custom_call.1} parent=5 // pred_region
        %s235 = ssub.s32 %s20, 1
        %s236 = sand.u32 %s47, 1
        %s237 = scalar_lea.sflag [#allocation4], %s236
        %s238 = sand.u32 %s47, 1
        %s239 = smul.addr %s238, 96
        %s240 = scalar_lea.vmem [#allocation3], %s239
        // Predicated region
        $region37: #{tpu_custom_call.1} parent=35 // pred_check
          %p241 = pneg %p60
        $region38: #{tpu_custom_call.1} parent=35 // pred_check_branch
          %243 = sbr.rel (%p241) target = $region40
        $region39: #{tpu_custom_call.1} parent=35 // pred_region
          %244 = dma.done %s237, 1536
        $region40: #{tpu_custom_call.1} parent=35 // pred_fallthru
          _
        %s245 = sand.u32 %s75, 1
        %s246 = scalar_lea.sflag [#allocation7], %s245
        %s247 = sand.u32 %s75, 1
        %s248 = smul.addr %s247, 64
        %s249 = scalar_lea.vmem [#allocation6], %s248
        // Predicated region
        $region41: #{tpu_custom_call.1} parent=35 // pred_check
          %p250 = pneg %p88
        $region42: #{tpu_custom_call.1} parent=35 // pred_check_branch
          %252 = sbr.rel (%p250) target = $region44
        $region43: #{tpu_custom_call.1} parent=35 // pred_region
          %253 = dma.done %s246, 1024
        $region44: #{tpu_custom_call.1} parent=35 // pred_fallthru
          _
        %s254 = sand.u32 %s47, 1
        %s255 = scalar_lea.sflag [#allocation4], %s254
        %s256 = sand.u32 %s47, 1
        %s257 = smul.addr %s256, 96
        %s258 = scalar_lea.vmem [#allocation3], %s257
        %p259 = pneg %p60
        %p260 = pneg %p57
        %s261 = sand.u32 %s75, 1
        %s262 = scalar_lea.sflag [#allocation7], %s261
        %s263 = sand.u32 %s75, 1
        %s264 = smul.addr %s263, 64
        %s265 = scalar_lea.vmem [#allocation6], %s264
        %p266 = pneg %p88
        %p267 = pneg %p85
        %p268 = pneg %p109
        %p269 = pneg %p106
        %p270 = pneg %p130
        %p271 = pneg %p127
        %p272 = pneg %p158
        %p273 = pneg %p155
        %s274 = sand.u32 %s145, 1
        %s275 = scalar_lea.sflag [#allocation5], %s274
        %s276 = sand.u32 %s145, 1
        %s277 = smul.addr %s276, 64
        %s278 = scalar_lea.vmem [#allocation8], %s277
        %s279 = smul.u32 2, %s30
        %s280 = smul.u32 2, %s30
        %s281 = smul.u32 2, %s30
        %v282 = vld [vmem:[%s240] sm:$0xff]
        %v283 = vld [vmem:[%s240 + $0x8] sm:$0xff]
        %v284 = vld [vmem:[%s240 + $0x10] sm:$0xff]
        %v285 = vld [vmem:[%s240 + $0x18] sm:$0xff]
        %v286 = vld [vmem:[%s240 + $0x20] sm:$0xff]
        %v287 = vld [vmem:[%s240 + $0x28] sm:$0xff]
        %v288 = vld [vmem:[%s240 + $0x30] sm:$0xff]
        %v289 = vld [vmem:[%s240 + $0x38] sm:$0xff]
        %v290 = vld [vmem:[%s240 + $0x40] sm:$0xff]
        %v291 = vld [vmem:[%s240 + $0x48] sm:$0xff]
        %v292 = vld [vmem:[%s240 + $0x50] sm:$0xff]
        %v293 = vld [vmem:[%s240 + $0x58] sm:$0xff]
        %v294 = vld [vmem:[%s2] sm:$0xff]
        %v295 = vld [vmem:[%s2 + $0x8] sm:$0xff]
        %v296 = vld [vmem:[%s2 + $0x10] sm:$0xff]
        %v297 = vld [vmem:[%s2 + $0x18] sm:$0xff]
        %v298 = vld [vmem:[%s2 + $0x20] sm:$0xff]
        %v299 = vld [vmem:[%s2 + $0x28] sm:$0xff]
        %301 = vset.pattern.permute.xlu0 0
        %302 = vperm.xlu0 %301, %v294
        %v303 = vpop.permute.xlu0 %302
        %306 = vset.pattern.permute.xlu0 0
        %307 = vperm.xlu0 %306, %v295
        %v308 = vpop.permute.xlu0 %307
        %311 = vset.pattern.permute.xlu0 0
        %312 = vperm.xlu0 %311, %v296
        %v313 = vpop.permute.xlu0 %312
        %316 = vset.pattern.permute.xlu0 0
        %317 = vperm.xlu0 %316, %v297
        %v318 = vpop.permute.xlu0 %317
        %321 = vset.pattern.permute.xlu0 0
        %322 = vperm.xlu0 %321, %v298
        %v323 = vpop.permute.xlu0 %322
        %326 = vset.pattern.permute.xlu0 0
        %327 = vperm.xlu0 %326, %v299
        %v328 = vpop.permute.xlu0 %327
        %v330 = vmul.f32 %v282, %v303
        %v331 = vmul.f32 %v283, %v303
        %v332 = vmul.f32 %v284, %v308
        %v333 = vmul.f32 %v285, %v308
        %v334 = vmul.f32 %v286, %v313
        %v335 = vmul.f32 %v287, %v313
        %v336 = vmul.f32 %v288, %v318
        %v337 = vmul.f32 %v289, %v318
        %v338 = vmul.f32 %v290, %v323
        %v339 = vmul.f32 %v291, %v323
        %v340 = vmul.f32 %v292, %v328
        %v341 = vmul.f32 %v293, %v328
        %v342 = vadd.f32 %v330, %v332
        %v343 = vadd.f32 %v342, %v334
        %v344 = vadd.f32 %v343, %v336
        %v345 = vadd.f32 %v344, %v338
        %v346 = vadd.f32 %v345, %v340
        %v347 = vrot.slane %v346, 4
        %v348 = vadd.f32 %v346, %v347
        %v349 = vrot.slane %v348, 2
        %v350 = vadd.f32 %v348, %v349
        %v351 = vrot.slane %v350, 1
        %v352 = vadd.f32 %v350, %v351
        %v353 = vadd.f32 %v331, %v333
        %v354 = vadd.f32 %v353, %v335
        %v355 = vadd.f32 %v354, %v337
        %v356 = vadd.f32 %v355, %v339
        %v357 = vadd.f32 %v356, %v341
        %v358 = vrot.slane %v357, 4
        %v359 = vadd.f32 %v357, %v358
        %v360 = vrot.slane %v359, 2
        %v361 = vadd.f32 %v359, %v360
        %v362 = vrot.slane %v361, 1
        %v363 = vadd.f32 %v361, %v362
        %s364 = sld [smem:[#allocation2]]
        %v365 = vstv %s364
        %v366 = vadd.f32 %v352, %v365
        %v367 = vadd.f32 %v363, %v365
        %v368 = vxor.u32 %v366, 2147483648
        %v369 = vxor.u32 %v367, 2147483648
        %v370 = vmul.f32 %v368, 1.442695
        %v371 = vpow.pop %v370
        %v372 = vmul.f32 %v369, 1.442695
        %v373 = vpow.pop %v372
        %v374 = vadd.f32 %v371, 1.0
        %v375 = vadd.f32 %v373, 1.0
        %v376 = vrcp.pop %v374
        %v377 = vmul.f32 1.0, %v376
        %v378 = vrcp.pop %v375
        %v379 = vmul.f32 1.0, %v378
        %v380 = vld [vmem:[%s249] sm:$0xff]
        %v381 = vld [vmem:[%s249 + $0x8] sm:$0xff]
        %v382 = vld [vmem:[%s249 + $0x10] sm:$0xff]
        %v383 = vld [vmem:[%s249 + $0x18] sm:$0xff]
        %v384 = vld [vmem:[%s249 + $0x20] sm:$0xff]
        %v385 = vld [vmem:[%s249 + $0x28] sm:$0xff]
        %v386 = vld [vmem:[%s249 + $0x30] sm:$0xff]
        %v387 = vld [vmem:[%s249 + $0x38] sm:$0xff]
        %v388 = vmul.f32 %v377, %v380
        %v389 = vmul.f32 %v379, %v381
        %v390 = vmul.f32 %v377, %v382
        %v391 = vmul.f32 %v379, %v383
        %v392 = vmul.f32 %v377, %v384
        %v393 = vmul.f32 %v379, %v385
        %v394 = vmul.f32 %v377, %v386
        %v395 = vmul.f32 %v379, %v387
        %396 = vst [vmem:[%s278] sm:$0xff] %v388
        %397 = vst [vmem:[%s278 + $0x8] sm:$0xff] %v389
        %398 = vst [vmem:[%s278 + $0x10] sm:$0xff] %v390
        %399 = vst [vmem:[%s278 + $0x18] sm:$0xff] %v391
        %400 = vst [vmem:[%s278 + $0x20] sm:$0xff] %v392
        %401 = vst [vmem:[%s278 + $0x28] sm:$0xff] %v393
        %402 = vst [vmem:[%s278 + $0x30] sm:$0xff] %v394
        %403 = vst [vmem:[%s278 + $0x38] sm:$0xff] %v395
        %s404 = sand.u32 %s145, 1
        %s405 = scalar_lea.sflag [#allocation5], %s404
        %s406 = sand.u32 %s145, 1
        %s407 = smul.addr %s406, 64
        %s408 = scalar_lea.vmem [#allocation8], %s407
        // Predicated region
        $region45: #{tpu_custom_call.1} parent=35 // pred_check
          %p409 = pneg %p155
        $region46: #{tpu_custom_call.1} parent=35 // pred_check_branch
          %411 = sbr.rel (%p409) target = $region48
        $region47: #{tpu_custom_call.1} parent=35 // pred_region
          %s412 = smul.u32 2, %s30
          %s414 = ssub.s32 1024, 1024
          %415 = vsyncadd %s405, %s414
          %s416 = smul.addr %s29, 8
          %s417 = sadd.s32 %s412, %s416
          %s418 = smul.addr %s417, 128
          %s419 = scalar_lea.hbm %s4, %s418
          %s420 = sshll.u32 %s408, 4
          %s421 = int_to_ptr.vmem [resolvable:$true] %s420
          %426 = dma.vmem_to_hbm [thread:$0]  %s421, 1024, %s419, %s405, 256, 256, 16
        $region48: #{tpu_custom_call.1} parent=35 // pred_fallthru
          _
      $region36: #{tpu_custom_call.1} parent=5 // pred_fallthru
        _
      %p427 = scmp.le.s32.totalorder 2, %s20
      // Predicated region
      $region49: #{tpu_custom_call.1} parent=5 // pred_check
        %p428 = pneg %p427
      $region50: #{tpu_custom_call.1} parent=5 // pred_check_branch
        %430 = sbr.rel (%p428) target = $region52
      $region51: #{tpu_custom_call.1} parent=5 // pred_region
        %s431 = ssub.s32 %s20, 2
        // Predicated region
        $region53: #{tpu_custom_call.1} parent=51 // pred_check
          %p432 = pneg %p161
        $region54: #{tpu_custom_call.1} parent=51 // pred_check_branch
          %434 = sbr.rel (%p432) target = $region56
        $region55: #{tpu_custom_call.1} parent=51 // pred_region
          %s435 = sand.u32 %s146, 1
          %s436 = scalar_lea.sflag [#allocation5], %s435
          %s437 = sand.u32 %s146, 1
          %s438 = smul.addr %s437, 64
          %s439 = scalar_lea.vmem [#allocation8], %s438
          %440 = dma.done %s436, 1024
        $region56: #{tpu_custom_call.1} parent=51 // pred_fallthru
          _
      $region52: #{tpu_custom_call.1} parent=5 // pred_fallthru
        _
    $region6: #{tpu_custom_call.1} parent=1 // loop_footer
      %s24 = sadd.s32 1, %s20
    $region7: #{tpu_custom_call.1} parent=1 // loop_footer_branch
      %19 = sbr.rel target = $region3
    $region8: #{tpu_custom_call.1} parent=1 // loop_exit
      _
    %441 = vsyncpa [#allocation4], 1
    %s442 = scalar_lea.sflag [#allocation4], 1
    %443 = vsyncpa %s442, 1
    %444 = vsyncpa [#allocation7], 1
    %s445 = scalar_lea.sflag [#allocation7], 1
    %446 = vsyncpa %s445, 1
    %447 = vsyncpa [#allocation5], 1
    %s448 = scalar_lea.sflag [#allocation5], 1
    %449 = vsyncpa %s448, 1

</llo_original>
